<compile_context>
chip_gen: v6e
topology: v6e:2x2x1
jax: 0.10.0
libtpu: 0.0.40
codegen_flags: <defaults>
</compile_context>

<pallas_src>
import itertools
from functools import partial

import numpy as np
import jax
import jax.numpy as jnp
from jax.experimental import pallas as pl
from jax.experimental.pallas import tpu as pltpu


_SPAN_HEADS = [
    ('sub_start_logits', 'sub_start_index'),
    ('sub_end_logits', 'sub_end_index'),
    ('obj_start_logits', 'obj_start_index'),
    ('obj_end_logits', 'obj_end_index'),
    ('aspect_start_logits', 'aspect_start_index'),
    ('aspect_end_logits', 'aspect_end_index'),
    ('opinion_start_logits', 'opinion_start_index'),
    ('opinion_end_logits', 'opinion_end_index'),
]

_ROW_TILE_CAP = 512  # rows of the [8N, L] entity slab processed per grid step


def _round_up(x, m):
    return ((x + m - 1) // m) * m


# ----------------------------------------------------------------------------
# Fused Pallas kernel
# ----------------------------------------------------------------------------
def _fused_loss_kernel(rel_logits_ref, rel_tgt_ref, tgt_len_ref,
                       ent_logits_ref, ent_tgt_ref, out_ref, *, na_coef):
    """Fused set-criterion reductions.

    out_ref (4,1) f32 layout:
      [0] sum_i w[y_i] * nll_i   (relation, weighted)
      [1] sum_i w[y_i]           (relation weight normalizer)
      [2] mean_b |card_pred_b - tgt_len_b|  (cardinality error, already /B)
      [3] sum over all 8N valid entity rows of unweighted NLL (accumulated over grid)
    """
    step = pl.program_id(0)

    # ---- relation CE + cardinality: computed once (rel inputs are grid-resident) ----
    @pl.when(step == 0)
    def _relation_and_cardinality():
        logits = rel_logits_ref[...].astype(jnp.float32)            # [B, Q, C]
        tgt = rel_tgt_ref[...]                                       # [B, Q, 1] int32
        B, Q, C = logits.shape
        lane = jax.lax.broadcasted_iota(jnp.int32, (B, Q, C), 2)     # built once, reused

        # weighted relation cross-entropy (sum of w*nll and sum of w; mean taken outside)
        m = jnp.max(logits, axis=-1, keepdims=True)
        lse = jnp.log(jnp.sum(jnp.exp(logits - m), axis=-1, keepdims=True)) + m
        tgt_logit = jnp.sum(jnp.where(lane == tgt, logits, 0.0),
                            axis=-1, keepdims=True)                  # [B, Q, 1]
        # class weight depends only on the target class: w = na_coef for class 0 else 1
        row_w = jnp.where(tgt == 0, jnp.float32(na_coef), jnp.float32(1.0))
        nll = row_w * (lse - tgt_logit)                              # [B, Q, 1]
        out_ref[0:1, :] = jnp.sum(jnp.sum(nll, axis=-1), axis=(0, 1), keepdims=True)
        out_ref[1:2, :] = jnp.sum(jnp.sum(row_w, axis=-1), axis=(0, 1), keepdims=True)

        # cardinality error: #(argmax != C-1) per batch, L1 to target length, mean over B
        last = jnp.sum(jnp.where(lane == C - 1, logits, 0.0), axis=-1)            # [B, Q]
        other_max = jnp.max(jnp.where(lane < C - 1, logits, -jnp.inf), axis=-1)   # [B, Q]
        # argmax(-1) != C-1  <=>  some earlier class >= last class (torch picks first max)
        indicator = (other_max >= last).astype(jnp.float32)
        card_pred = jnp.sum(indicator, axis=-1, keepdims=True)                    # [B, 1]
        err = jnp.abs(card_pred - tgt_len_ref[...].astype(jnp.float32))           # [B, 1]
        out_ref[2:3, :] = jnp.sum(err, axis=(0, 1), keepdims=True) * (1.0 / B)

        # init entity accumulator slot
        out_ref[3:4, :] = jnp.zeros((1, 1), jnp.float32)

    # ---- unweighted entity CE: partial sum for this row tile (accumulated) ----
    logits_e = ent_logits_ref[...].astype(jnp.float32)               # [T, L]
    tgt_e = ent_tgt_ref[...]                                         # [T, 1] int32; -1 = pad row
    T, L = logits_e.shape
    lane_e = jax.lax.broadcasted_iota(jnp.int32, (T, L), 1)
    m_e = jnp.max(logits_e, axis=-1, keepdims=True)
    lse_e = jnp.log(jnp.sum(jnp.exp(logits_e - m_e), axis=-1, keepdims=True)) + m_e
    tgt_logit_e = jnp.sum(jnp.where(lane_e == tgt_e, logits_e, 0.0),
                          axis=-1, keepdims=True)                    # [T, 1]
    valid = (tgt_e >= 0).astype(jnp.float32)                         # mask padded rows
    nll_e = valid * (lse_e - tgt_logit_e)                            # [T, 1]
    out_ref[3:4, :] = out_ref[3:4, :] + jnp.sum(nll_e, axis=(0, 1), keepdims=True)


def fused_set_losses(rel_logits, rel_tgt, tgt_len, ent_logits, ent_tgt,
                     *, na_coef, row_tile):
    """Single pallas_call computing all loss reductions. Returns a (4,1) f32 array."""
    B, Q, C = rel_logits.shape
    ne, L = ent_logits.shape
    num_tiles = ne // row_tile
    kernel = partial(_fused_loss_kernel, na_coef=float(na_coef))
    return pl.pallas_call(
        kernel,
        out_shape=jax.ShapeDtypeStruct((4, 1), jnp.float32),
        grid=(num_tiles,),
        in_specs=[
            pl.BlockSpec((B, Q, C), lambda i: (0, 0, 0)),        # resident across grid
            pl.BlockSpec((B, Q, 1), lambda i: (0, 0, 0)),        # int32 targets (no one-hot)
            pl.BlockSpec((B, 1), lambda i: (0, 0)),              # target lengths
            pl.BlockSpec((row_tile, L), lambda i: (i, 0)),       # row-tiled entity slab
            pl.BlockSpec((row_tile, 1), lambda i: (i, 0)),       # int32 entity targets
        ],
        out_specs=pl.BlockSpec((4, 1), lambda i: (0, 0)),        # resident accumulator
        # TODO(synk): for v7x megacore, split the row axis "parallel" with per-core
        # partial sums reduced outside instead of accumulating into one resident output.
        compiler_params=pltpu.CompilerParams(dimension_semantics=("arbitrary",)),
    )(rel_logits, rel_tgt, tgt_len, ent_logits, ent_tgt)


# ----------------------------------------------------------------------------
# SetCriterion wrapper
# ----------------------------------------------------------------------------
class SetCriterionPallas:
    def __init__(self, num_classes, na_coef, losses):
        self.num_classes = num_classes
        self.na_coef = float(na_coef)
        self.losses = losses

    # --------------------------- matcher -------------------------------------
    def matcher(self, outputs, targets):
        # Cost matrices are built on device; only the small [Q, T_b] matrices are
        # transferred to host for the assignment search.
        p_rel = jax.nn.softmax(outputs['pred_rel_logits'], axis=-1)          # [B,Q,C]
        span_p = {lk: jax.nn.softmax(outputs[lk], axis=-1) for lk, _ in _SPAN_HEADS}

        cost_list = []
        for b, t in enumerate(targets):
            rel = np.asarray(t['relation'])
            if len(rel) == 0:
                cost_list.append(None)
                continue
            cd = -jnp.take(p_rel[b], jnp.asarray(rel, dtype=jnp.int32), axis=-1)   # [Q,T]
            for lk, ik in _SPAN_HEADS:
                idx = jnp.asarray(np.asarray(t[ik]), dtype=jnp.int32)
                cd = cd - 0.5 * jnp.take(span_p[lk][b], idx, axis=-1)
            cost_list.append(cd)
        costs = jax.device_get(cost_list)   # one small host transfer

        indices = []
        for b, t in enumerate(targets):
            rel = np.asarray(t['relation'])
            T = len(rel)
            if T == 0:
                indices.append((np.array([], np.int64), np.array([], np.int64)))
                continue
            cost = np.asarray(costs[b])                                      # [Q, T]
            Q = cost.shape[0]
            # TODO(synk): scipy.optimize.linear_sum_assignment (Hungarian) has no Pallas
            # equivalent; exact brute-force over permutations gives the same optimum at
            # these small Q/T and runs on host from the tiny cost matrix only.
            best, best_c = None, np.inf
            for perm in itertools.permutations(range(Q), T):
                c = cost[list(perm), np.arange(T)].sum()
                if c < best_c:
                    best_c, best = c, np.array(perm)
            order = np.argsort(best)
            indices.append((best[order], np.arange(T)[order]))
        return indices

    # --------------------------- forward --------------------------------------
    @staticmethod
    def empty_targets(targets):
        return all(len(t['relation']) == 0 for t in targets)

    def forward(self, outputs, targets):
        indices = self.matcher(outputs, targets)

        rel_logits = outputs['pred_rel_logits']                      # [B, Q, C]
        B, Q, C = rel_logits.shape

        # relation targets (default class 0 = NA), scattered on host (tiny), int32 to device
        target_classes = np.zeros((B, Q), np.int32)
        for b, ((src, tgt), t) in enumerate(zip(indices, targets)):
            if len(src):
                target_classes[b, np.asarray(src)] = np.asarray(t['relation'])[np.asarray(tgt)]
        rel_tgt = jnp.asarray(target_classes.reshape(B, Q, 1))
        tgt_len = jnp.asarray(
            np.asarray([len(t['labels']) for t in targets], np.float32).reshape(B, 1))

        # entity slab: gather matched rows of the 8 span heads on device -> [8N, L]
        do_entity = ('entity' in self.losses) and not self.empty_targets(targets)
        L = outputs[_SPAN_HEADS[0][0]].shape[-1]
        if do_entity:
            batch_idx = np.concatenate(
                [np.full(len(src), b, np.int64) for b, (src, _) in enumerate(indices)])
            src_idx = np.concatenate([np.asarray(src) for src, _ in indices])
            n_matched = int(src_idx.shape[0])
            sel = [outputs[lk][batch_idx, src_idx] for lk, _ in _SPAN_HEADS]   # device gathers
            ent_logits = jnp.concatenate(sel, axis=0)                          # [8N, L]
            ent_tgt_np = np.concatenate(
                [np.concatenate([np.asarray(t[ik])[np.asarray(i)]
                                 for t, (_, i) in zip(targets, indices)])
                 for _, ik in _SPAN_HEADS]).astype(np.int32)                   # [8N]
        else:
            n_matched = 1
            ent_logits = jnp.zeros((8, L), jnp.float32)
            ent_tgt_np = np.full((8,), -1, np.int32)                           # all padded

        # pad entity rows so the row axis can be gridded; padded rows flagged with -1
        ne = int(ent_logits.shape[0])
        ne_pad = _round_up(ne, 8)
        if ne_pad <= _ROW_TILE_CAP:
            row_tile = ne_pad
        else:
            row_tile = _ROW_TILE_CAP
            ne_pad = _round_up(ne, _ROW_TILE_CAP)
        if ne_pad != ne:
            ent_logits = jnp.concatenate(
                [ent_logits, jnp.zeros((ne_pad - ne, L), ent_logits.dtype)], axis=0)
            ent_tgt_np = np.concatenate(
                [ent_tgt_np, np.full((ne_pad - ne,), -1, np.int32)])
        ent_tgt = jnp.asarray(ent_tgt_np.reshape(ne_pad, 1))

        sums = fused_set_losses(rel_logits, rel_tgt, tgt_len, ent_logits, ent_tgt,
                                na_coef=self.na_coef, row_tile=row_tile)

        total = jnp.float32(0.0)
        for loss in self.losses:
            if loss == 'relation':
                total = total + sums[0, 0] / sums[1, 0]
            elif loss == 'cardinality':
                total = total + sums[2, 0]
            elif loss == 'entity':
                if do_entity:
                    # 0.5*(sub_s+sub_e)+0.5*(obj_s+obj_e)+0.5*(asp_s+asp_e)+0.5*(op_s+op_e)
                    # == 0.5 * (total NLL over the 8N rows) / N
                    total = total + 0.5 * sums[3, 0] / n_matched
            else:
                raise ValueError(f"unknown loss {loss}")
        return total


# ----------------------------------------------------------------------------
# main
# ----------------------------------------------------------------------------
if __name__ == "__main__":
    B, Q, C, L, T = 2, 8, 4, 32, 3   # batch, queries, relation classes, seq len, gt triples

    key = jax.random.PRNGKey(0)
    keys = jax.random.split(key, 1 + len(_SPAN_HEADS))
    outputs = {'pred_rel_logits': jax.random.normal(keys[0], (B, Q, C), jnp.float32)}
    for i, (lk, _) in enumerate(_SPAN_HEADS):
        outputs[lk] = jax.random.normal(keys[1 + i], (B, Q, L), jnp.float32)

    targets = []
    for b in range(B):
        kb = jax.random.fold_in(key, 100 + b)
        rel = np.asarray(jax.random.randint(kb, (T,), 1, C))        # non-NA relations
        tdict = {'relation': rel, 'labels': rel}
        for j, (_, ik) in enumerate(_SPAN_HEADS):
            tdict[ik] = np.asarray(
                jax.random.randint(jax.random.fold_in(kb, j + 1), (T,), 0, L))
        targets.append(tdict)

    criterion = SetCriterionPallas(num_classes=C, na_coef=0.25,
                                   losses=['relation', 'cardinality', 'entity'])
    loss = criterion.forward(outputs, targets)
    jax.block_until_ready(loss)
    assert np.isfinite(float(loss))
    print("KERNEL_OK")
</pallas_src>

<mosaic_0001>
module attributes {stable_mosaic.version = 11 : i64} {
  func.func @_fused_loss_kernel(%arg0: i32, %arg1: memref<2x8x4xf32, #tpu.memory_space<vmem>>, %arg2: memref<2x8x1xi32, #tpu.memory_space<vmem>>, %arg3: memref<2x1xf32, #tpu.memory_space<vmem>>, %arg4: memref<48x32xf32, #tpu.memory_space<vmem>>, %arg5: memref<48x1xi32, #tpu.memory_space<vmem>>, %arg6: memref<4x1xf32, #tpu.memory_space<vmem>>) attributes {dimension_semantics = [#tpu.dimension_semantics<arbitrary>], iteration_bounds = array<i64: 1>, scalar_prefetch = 0 : i64, scratch_operands = 0 : i64, tpu.core_type = #tpu.core_type<tc>, window_params = [{pipeline_mode = #tpu.pipeline_mode<synchronous>, transform_indices = @transform_0, window_bounds = array<i64: 2, 8, 4>}, {pipeline_mode = #tpu.pipeline_mode<synchronous>, transform_indices = @transform_1, window_bounds = array<i64: 2, 8, 1>}, {pipeline_mode = #tpu.pipeline_mode<synchronous>, transform_indices = @transform_2, window_bounds = array<i64: 2, 1>}, {transform_indices = @transform_3, window_bounds = array<i64: 48, 32>}, {transform_indices = @transform_4, window_bounds = array<i64: 48, 1>}, {pipeline_mode = #tpu.pipeline_mode<synchronous>, transform_indices = @transform_5, window_bounds = array<i64: 4, 1>}]} {
    %c0_i32 = arith.constant 0 : i32
    %0 = arith.cmpi eq, %arg0, %c0_i32 : i32
    %1 = arith.extui %0 : i1 to i32
    %c0_i32_0 = arith.constant 0 : i32
    %2 = arith.cmpi ne, %1, %c0_i32_0 : i32
    scf.if %2 {
      %c0_12 = arith.constant 0 : index
      %c0_13 = arith.constant 0 : index
      %c0_14 = arith.constant 0 : index
      %35 = vector.load %arg1[%c0_12, %c0_13, %c0_14] : memref<2x8x4xf32, #tpu.memory_space<vmem>>, vector<2x8x4xf32>
      %c0_15 = arith.constant 0 : index
      %c0_16 = arith.constant 0 : index
      %c0_17 = arith.constant 0 : index
      %36 = vector.load %arg2[%c0_15, %c0_16, %c0_17] : memref<2x8x1xi32, #tpu.memory_space<vmem>>, vector<2x8x1xi32>
      %37 = tpu.iota {dimensions = array<i32: 2>} : vector<2x8x4xi32>
      %cst_18 = arith.constant dense<0xFF800000> : vector<2x8xf32>
      %38 = vector.multi_reduction <maximumf>, %35, %cst_18 [2] : vector<2x8x4xf32> to vector<2x8xf32>
      %39 = vector.shape_cast %38 : vector<2x8xf32> to vector<2x8x1xf32>
      %40 = vector.broadcast %39 : vector<2x8x1xf32> to vector<2x8x4xf32>
      %41 = arith.subf %35, %40 : vector<2x8x4xf32>
      %42 = math.exp %41 : vector<2x8x4xf32>
      %cst_19 = arith.constant dense<0.000000e+00> : vector<2x8xf32>
      %43 = vector.multi_reduction <add>, %42, %cst_19 [2] : vector<2x8x4xf32> to vector<2x8xf32>
      %44 = vector.shape_cast %43 : vector<2x8xf32> to vector<2x8x1xf32>
      %45 = math.log %44 : vector<2x8x1xf32>
      %46 = arith.addf %45, %39 : vector<2x8x1xf32>
      %47 = vector.broadcast %36 : vector<2x8x1xi32> to vector<2x8x4xi32>
      %48 = arith.cmpi eq, %37, %47 : vector<2x8x4xi32>
      %cst_20 = arith.constant 0.000000e+00 : f32
      %49 = vector.broadcast %cst_20 : f32 to vector<2x8x4xf32>
      %50 = arith.select %48, %35, %49 : vector<2x8x4xi1>, vector<2x8x4xf32>
      %cst_21 = arith.constant dense<0.000000e+00> : vector<2x8xf32>
      %51 = vector.multi_reduction <add>, %50, %cst_21 [2] : vector<2x8x4xf32> to vector<2x8xf32>
      %52 = vector.shape_cast %51 : vector<2x8xf32> to vector<2x8x1xf32>
      %c0_i32_22 = arith.constant 0 : i32
      %53 = vector.broadcast %c0_i32_22 : i32 to vector<2x8x1xi32>
      %54 = arith.cmpi eq, %36, %53 : vector<2x8x1xi32>
      %cst_23 = arith.constant 2.500000e-01 : f32
      %cst_24 = arith.constant 1.000000e+00 : f32
      %55 = vector.broadcast %cst_23 : f32 to vector<2x8x1xf32>
      %56 = vector.broadcast %cst_24 : f32 to vector<2x8x1xf32>
      %57 = arith.select %54, %55, %56 : vector<2x8x1xi1>, vector<2x8x1xf32>
      %58 = arith.subf %46, %52 : vector<2x8x1xf32>
      %59 = arith.mulf %57, %58 : vector<2x8x1xf32>
      %cst_25 = arith.constant dense<0.000000e+00> : vector<2x8xf32>
      %60 = vector.multi_reduction <add>, %59, %cst_25 [2] : vector<2x8x1xf32> to vector<2x8xf32>
      %61 = vector.shape_cast %60 : vector<2x8xf32> to vector<1x2x8xf32>
      %cst_26 = arith.constant dense<0.000000e+00> : vector<1xf32>
      %62 = vector.multi_reduction <add>, %61, %cst_26 [1, 2] : vector<1x2x8xf32> to vector<1xf32>
      %63 = vector.shape_cast %62 : vector<1xf32> to vector<1x1x1xf32>
      %64 = vector.extract %63[0, 0, 0] : f32 from vector<1x1x1xf32>
      %65 = vector.broadcast %64 : f32 to vector<1x1xf32>
      %c0_27 = arith.constant 0 : index
      %c0_28 = arith.constant 0 : index
      %66 = vector.load %arg6[%c0_27, %c0_28] : memref<4x1xf32, #tpu.memory_space<vmem>>, vector<1x1xf32>
      tpu.vector_store %arg6[%c0_27, %c0_28], %65 {strides = array<i32>} : memref<4x1xf32, #tpu.memory_space<vmem>>, vector<1x1xf32>,
      %cst_29 = arith.constant dense<0.000000e+00> : vector<2x8xf32>
      %67 = vector.multi_reduction <add>, %57, %cst_29 [2] : vector<2x8x1xf32> to vector<2x8xf32>
      %68 = vector.shape_cast %67 : vector<2x8xf32> to vector<1x2x8xf32>
      %cst_30 = arith.constant dense<0.000000e+00> : vector<1xf32>
      %69 = vector.multi_reduction <add>, %68, %cst_30 [1, 2] : vector<1x2x8xf32> to vector<1xf32>
      %70 = vector.shape_cast %69 : vector<1xf32> to vector<1x1x1xf32>
      %71 = vector.extract %70[0, 0, 0] : f32 from vector<1x1x1xf32>
      %72 = vector.broadcast %71 : f32 to vector<1x1xf32>
      %c1 = arith.constant 1 : index
      %c0_31 = arith.constant 0 : index
      %73 = vector.load %arg6[%c1, %c0_31] : memref<4x1xf32, #tpu.memory_space<vmem>>, vector<1x1xf32>
      tpu.vector_store %arg6[%c1, %c0_31], %72 {strides = array<i32>} : memref<4x1xf32, #tpu.memory_space<vmem>>, vector<1x1xf32>,
      %c3_i32 = arith.constant 3 : i32
      %74 = vector.broadcast %c3_i32 : i32 to vector<2x8x4xi32>
      %75 = arith.cmpi eq, %37, %74 : vector<2x8x4xi32>
      %cst_32 = arith.constant 0.000000e+00 : f32
      %76 = vector.broadcast %cst_32 : f32 to vector<2x8x4xf32>
      %77 = arith.select %75, %35, %76 : vector<2x8x4xi1>, vector<2x8x4xf32>
      %cst_33 = arith.constant dense<0.000000e+00> : vector<2x8xf32>
      %78 = vector.multi_reduction <add>, %77, %cst_33 [2] : vector<2x8x4xf32> to vector<2x8xf32>
      %c3_i32_34 = arith.constant 3 : i32
      %79 = vector.broadcast %c3_i32_34 : i32 to vector<2x8x4xi32>
      %80 = arith.cmpi slt, %37, %79 : vector<2x8x4xi32>
      %cst_35 = arith.constant 0xFF800000 : f32
      %81 = vector.broadcast %cst_35 : f32 to vector<2x8x4xf32>
      %82 = arith.select %80, %35, %81 : vector<2x8x4xi1>, vector<2x8x4xf32>
      %cst_36 = arith.constant dense<0xFF800000> : vector<2x8xf32>
      %83 = vector.multi_reduction <maximumf>, %82, %cst_36 [2] : vector<2x8x4xf32> to vector<2x8xf32>
      %84 = arith.cmpf oge, %83, %78 : vector<2x8xf32>
      %85 = arith.extui %84 : vector<2x8xi1> to vector<2x8xi32>
      %86 = arith.sitofp %85 : vector<2x8xi32> to vector<2x8xf32>
      %cst_37 = arith.constant dense<0.000000e+00> : vector<2xf32>
      %87 = vector.multi_reduction <add>, %86, %cst_37 [1] : vector<2x8xf32> to vector<2xf32>
      %88 = vector.shape_cast %87 : vector<2xf32> to vector<2x1xf32>
      %c0_38 = arith.constant 0 : index
      %c0_39 = arith.constant 0 : index
      %89 = vector.load %arg3[%c0_38, %c0_39] : memref<2x1xf32, #tpu.memory_space<vmem>>, vector<2x1xf32>
      %90 = arith.subf %88, %89 : vector<2x1xf32>
      %91 = math.absf %90 : vector<2x1xf32>
      %92 = vector.shape_cast %91 : vector<2x1xf32> to vector<1x2x1xf32>
      %cst_40 = arith.constant dense<0.000000e+00> : vector<1xf32>
      %93 = vector.multi_reduction <add>, %92, %cst_40 [1, 2] : vector<1x2x1xf32> to vector<1xf32>
      %94 = vector.shape_cast %93 : vector<1xf32> to vector<1x1x1xf32>
      %95 = vector.extract %94[0, 0, 0] : f32 from vector<1x1x1xf32>
      %96 = vector.broadcast %95 : f32 to vector<1x1xf32>
      %cst_41 = arith.constant 5.000000e-01 : f32
      %97 = vector.broadcast %cst_41 : f32 to vector<1x1xf32>
      %98 = arith.mulf %96, %97 : vector<1x1xf32>
      %c2 = arith.constant 2 : index
      %c0_42 = arith.constant 0 : index
      %99 = vector.load %arg6[%c2, %c0_42] : memref<4x1xf32, #tpu.memory_space<vmem>>, vector<1x1xf32>
      tpu.vector_store %arg6[%c2, %c0_42], %98 {strides = array<i32>} : memref<4x1xf32, #tpu.memory_space<vmem>>, vector<1x1xf32>,
      %cst_43 = arith.constant 0.000000e+00 : f32
      %100 = vector.broadcast %cst_43 : f32 to vector<1x1xf32>
      %c3_44 = arith.constant 3 : index
      %c0_45 = arith.constant 0 : index
      %101 = vector.load %arg6[%c3_44, %c0_45] : memref<4x1xf32, #tpu.memory_space<vmem>>, vector<1x1xf32>
      tpu.vector_store %arg6[%c3_44, %c0_45], %100 {strides = array<i32>} : memref<4x1xf32, #tpu.memory_space<vmem>>, vector<1x1xf32>,
    } else {
    }
    %c0 = arith.constant 0 : index
    %c0_1 = arith.constant 0 : index
    %3 = vector.load %arg4[%c0, %c0_1] : memref<48x32xf32, #tpu.memory_space<vmem>>, vector<48x32xf32>
    %c0_2 = arith.constant 0 : index
    %c0_3 = arith.constant 0 : index
    %4 = vector.load %arg5[%c0_2, %c0_3] : memref<48x1xi32, #tpu.memory_space<vmem>>, vector<48x1xi32>
    %5 = tpu.iota {dimensions = array<i32: 1>} : vector<48x32xi32>
    %cst = arith.constant dense<0xFF800000> : vector<48xf32>
    %6 = vector.multi_reduction <maximumf>, %3, %cst [1] : vector<48x32xf32> to vector<48xf32>
    %7 = vector.shape_cast %6 : vector<48xf32> to vector<48x1xf32>
    %8 = vector.broadcast %7 : vector<48x1xf32> to vector<48x32xf32>
    %9 = arith.subf %3, %8 : vector<48x32xf32>
    %10 = math.exp %9 : vector<48x32xf32>
    %cst_4 = arith.constant dense<0.000000e+00> : vector<48xf32>
    %11 = vector.multi_reduction <add>, %10, %cst_4 [1] : vector<48x32xf32> to vector<48xf32>
    %12 = vector.shape_cast %11 : vector<48xf32> to vector<48x1xf32>
    %13 = math.log %12 : vector<48x1xf32>
    %14 = arith.addf %13, %7 : vector<48x1xf32>
    %15 = vector.broadcast %4 : vector<48x1xi32> to vector<48x32xi32>
    %16 = arith.cmpi eq, %5, %15 : vector<48x32xi32>
    %cst_5 = arith.constant 0.000000e+00 : f32
    %17 = vector.broadcast %cst_5 : f32 to vector<48x32xf32>
    %18 = arith.select %16, %3, %17 : vector<48x32xi1>, vector<48x32xf32>
    %cst_6 = arith.constant dense<0.000000e+00> : vector<48xf32>
    %19 = vector.multi_reduction <add>, %18, %cst_6 [1] : vector<48x32xf32> to vector<48xf32>
    %20 = vector.shape_cast %19 : vector<48xf32> to vector<48x1xf32>
    %c0_i32_7 = arith.constant 0 : i32
    %21 = vector.broadcast %c0_i32_7 : i32 to vector<48x1xi32>
    %22 = arith.cmpi sge, %4, %21 : vector<48x1xi32>
    %23 = arith.extui %22 : vector<48x1xi1> to vector<48x1xi32>
    %24 = arith.sitofp %23 : vector<48x1xi32> to vector<48x1xf32>
    %25 = arith.subf %14, %20 : vector<48x1xf32>
    %26 = arith.mulf %24, %25 : vector<48x1xf32>
    %c3 = arith.constant 3 : index
    %c0_8 = arith.constant 0 : index
    %27 = vector.load %arg6[%c3, %c0_8] : memref<4x1xf32, #tpu.memory_space<vmem>>, vector<1x1xf32>
    %28 = vector.shape_cast %26 : vector<48x1xf32> to vector<1x48x1xf32>
    %cst_9 = arith.constant dense<0.000000e+00> : vector<1xf32>
    %29 = vector.multi_reduction <add>, %28, %cst_9 [1, 2] : vector<1x48x1xf32> to vector<1xf32>
    %30 = vector.shape_cast %29 : vector<1xf32> to vector<1x1x1xf32>
    %31 = vector.extract %30[0, 0, 0] : f32 from vector<1x1x1xf32>
    %32 = vector.broadcast %31 : f32 to vector<1x1xf32>
    %33 = arith.addf %27, %32 : vector<1x1xf32>
    %c3_10 = arith.constant 3 : index
    %c0_11 = arith.constant 0 : index
    %34 = vector.load %arg6[%c3_10, %c0_11] : memref<4x1xf32, #tpu.memory_space<vmem>>, vector<1x1xf32>
    tpu.vector_store %arg6[%c3_10, %c0_11], %33 {strides = array<i32>} : memref<4x1xf32, #tpu.memory_space<vmem>>, vector<1x1xf32>,
    return
  }
  func.func @transform_0(%arg0: i32) -> (i32, i32, i32) {
    %c0_i32 = arith.constant 0 : i32
    %c0_i32_0 = arith.constant 0 : i32
    %c0_i32_1 = arith.constant 0 : i32
    %c0_i32_2 = arith.constant 0 : i32
    return %c0_i32, %c0_i32_0, %c0_i32_1 : i32, i32, i32
  }
  func.func @transform_1(%arg0: i32) -> (i32, i32, i32) {
    %c0_i32 = arith.constant 0 : i32
    %c0_i32_0 = arith.constant 0 : i32
    %c0_i32_1 = arith.constant 0 : i32
    %c0_i32_2 = arith.constant 0 : i32
    return %c0_i32, %c0_i32_0, %c0_i32_1 : i32, i32, i32
  }
  func.func @transform_2(%arg0: i32) -> (i32, i32) {
    %c0_i32 = arith.constant 0 : i32
    %c0_i32_0 = arith.constant 0 : i32
    %c0_i32_1 = arith.constant 0 : i32
    return %c0_i32, %c0_i32_0 : i32, i32
  }
  func.func @transform_3(%arg0: i32) -> (i32, i32) {
    %c0_i32 = arith.constant 0 : i32
    %c0_i32_0 = arith.constant 0 : i32
    return %arg0, %c0_i32 : i32, i32
  }
  func.func @transform_4(%arg0: i32) -> (i32, i32) {
    %c0_i32 = arith.constant 0 : i32
    %c0_i32_0 = arith.constant 0 : i32
    return %arg0, %c0_i32 : i32, i32
  }
  func.func @transform_5(%arg0: i32) -> (i32, i32) {
    %c0_i32 = arith.constant 0 : i32
    %c0_i32_0 = arith.constant 0 : i32
    %c0_i32_1 = arith.constant 0 : i32
    return %c0_i32, %c0_i32_0 : i32, i32
  }
}

</mosaic_0001>

<llo_original>
// kernel: tpu_custom_call.1
$region0: #{tpu_custom_call.1}
  #allocation0 [shape = 'u32[]', space=smem, size = 0x4, offset = 0x4, fixed_abs, tag = 'smem constant byte address 0x4 - core index']
  #allocation1 [shape = 'u32[144,128]{1,0:T(1,128)}', space=vmem, size = 0x12000, scoped, tag = 'internal scratch']
  %s0 = inlined_call_operand.vmem [shape: f32[2,8,4], index: 0, kind: input, shape index: {}]
  %s1 = inlined_call_operand.vmem [shape: s32[2,8,1], index: 1, kind: input, shape index: {}]
  %s2 = inlined_call_operand.vmem [shape: f32[2,1], index: 2, kind: input, shape index: {}]
  %s3 = inlined_call_operand.vmem [shape: f32[48,32], index: 3, kind: input, shape index: {}]
  %s4 = inlined_call_operand.vmem [shape: s32[48,1], index: 4, kind: input, shape index: {}]
  %s5 = inlined_call_operand.vmem [shape: f32[4,1], index: 5, kind: output, shape index: {}]
  %s6 = sld [smem:[#allocation0]]
  $region34: #{tpu_custom_call.1} parent=0
    _
  %s8 = ssub.s32 1, %s6
  %s9 = scalar_select 0, %s8, %s6
  // Predicated region
  $region2: #{tpu_custom_call.1} parent=0 // pred_check
    _
  $region3: #{tpu_custom_call.1} parent=0 // pred_check_branch
    %11 = sbr.rel (0) target = $region5
  $region4: #{tpu_custom_call.1} parent=0 // pred_region
    _
  $region5: #{tpu_custom_call.1} parent=0 // pred_fallthru
    _
  // Predicated region
  $region6: #{tpu_custom_call.1} parent=0 // pred_check
    _
  $region7: #{tpu_custom_call.1} parent=0 // pred_check_branch
    %13 = sbr.rel (0) target = $region9
  $region8: #{tpu_custom_call.1} parent=0 // pred_region
    _
  $region9: #{tpu_custom_call.1} parent=0 // pred_fallthru
    _
  // Predicated region
  $region10: #{tpu_custom_call.1} parent=0 // pred_check
    _
  $region11: #{tpu_custom_call.1} parent=0 // pred_check_branch
    %15 = sbr.rel (0) target = $region13
  $region12: #{tpu_custom_call.1} parent=0 // pred_region
    _
  $region13: #{tpu_custom_call.1} parent=0 // pred_fallthru
    _
  // Predicated region
  $region14: #{tpu_custom_call.1} parent=0 // pred_check
    _
  $region15: #{tpu_custom_call.1} parent=0 // pred_check_branch
    %17 = sbr.rel (0) target = $region17
  $region16: #{tpu_custom_call.1} parent=0 // pred_region
    _
  $region17: #{tpu_custom_call.1} parent=0 // pred_fallthru
    _
  // Predicated region
  $region18: #{tpu_custom_call.1} parent=0 // pred_check
    _
  $region19: #{tpu_custom_call.1} parent=0 // pred_check_branch
    %19 = sbr.rel (0) target = $region21
  $region20: #{tpu_custom_call.1} parent=0 // pred_region
    _
  $region21: #{tpu_custom_call.1} parent=0 // pred_fallthru
    _
  %p20 = scmp.eq.s32.totalorder 0, 0
  // Predicated region
  $region22: #{tpu_custom_call.1} parent=0 // pred_check
    %p21 = pneg %p20
  $region23: #{tpu_custom_call.1} parent=0 // pred_check_branch
    %23 = sbr.rel (%p21) target = $region25
  $region24: #{tpu_custom_call.1} parent=0 // pred_region
    %v24 = vld [vmem:[%s0] sm:$0xff]
    %v25 = vld [vmem:[%s0 + $0x8] sm:$0xff]
    %v26 = vld [vmem:[%s1] sm:$0xff]
    %v27 = vld [vmem:[%s1 + $0x8] sm:$0xff]
    %v28 = vlaneseq
    %v29 = vand.u32 %v28, 127
    %vm30 = vcmask 31744
    %v31 = vsel %vm30, %v24, -inf
    %32 = vmax.xlane.f32.xlu0 %v31
    %v33 = vpop.xlane.xlu0 %32
    %v34 = vsel %vm30, %v25, -inf
    %35 = vmax.xlane.f32.xlu0 %v34
    %v36 = vpop.xlane.xlu0 %35
    %v37 = vsub.f32 %v24, %v33
    %v38 = vsub.f32 %v25, %v36
    %v39 = vmul.f32 %v37, 1.442695
    %v40 = vpow.pop %v39
    %v41 = vmul.f32 %v38, 1.442695
    %v42 = vpow.pop %v41
    %v43 = vsel %vm30, %v40, 0.0
    %44 = vadd.xlane.f32.xlu0 %v43
    %v45 = vpop.xlane.xlu0 %44
    %v46 = vsel %vm30, %v42, 0.0
    %47 = vadd.xlane.f32.xlu0 %v46
    %v48 = vpop.xlane.xlu0 %47
    %v49 = vlog2.pop %v45
    %v50 = vmul.f32 %v49, 0.6931472
    %v51 = vlog2.pop %v48
    %v52 = vmul.f32 %v51, 0.6931472
    %v53 = vadd.f32 %v50, %v33
    %v54 = vadd.f32 %v52, %v36
    %55 = vset.pattern.permute.xlu0 0
    %56 = vperm.xlu0 %55, %v26
    %v57 = vpop.permute.xlu0 %56
    %58 = vset.pattern.permute.xlu0 0
    %59 = vperm.xlu0 %58, %v27
    %v60 = vpop.permute.xlu0 %59
    %vm61 = vcmp.eq.s32.totalorder %v29, %v57
    %vm62 = vcmp.eq.s32.totalorder %v29, %v60
    %v63 = vsel %vm61, %v24, 0.0
    %v64 = vsel %vm62, %v25, 0.0
    %v65 = vsel %vm30, %v63, 0.0
    %66 = vadd.xlane.f32.xlu0 %v65
    %v67 = vpop.xlane.xlu0 %66
    %v68 = vsel %vm30, %v64, 0.0
    %69 = vadd.xlane.f32.xlu0 %v68
    %v70 = vpop.xlane.xlu0 %69
    %vm71 = vcmp.eq.s32.totalorder %v26, 0
    %vm72 = vcmp.eq.s32.totalorder %v27, 0
    %v73 = vsel %vm71, 0.25, 1.0
    %v74 = vsel %vm72, 0.25, 1.0
    %v75 = vsub.f32 %v53, %v67
    %v76 = vsub.f32 %v54, %v70
    %v77 = vmul.f32 %v73, %v75
    %v78 = vmul.f32 %v74, %v76
    %v79 = vadd.f32 %v77, 0.0
    %v80 = vadd.f32 %v78, 0.0
    %83 = vset.pattern.permute.xlu0 0
    %84 = vperm.xlu0 %83, %v79
    %v85 = vpop.permute.xlu0 %84
    %86 = vset.pattern.permute.xlu0 0
    %87 = vperm.xlu0 %86, %v80
    %v88 = vpop.permute.xlu0 %87
    %v89 = vlaneseq
    %v90 = vshrl.u32 %v89, 7
    %v91 = vsub.s32 %v29, %v90
    %v92 = vrot.slane %v85, %v91
    %v93 = vlaneseq
    %v94 = vshrl.u32 %v93, 7
    %v95 = vsub.s32 %v29, %v94
    %v96 = vrot.slane %v88, %v95
    %vm97 = vcmask 1041409
    %v98 = vsel %vm97, %v96, %v92
    %vm100 = vcmask 58368
    %v101 = vsel %vm100, %v98, 0.0
    %102 = vadd.xlane.f32.xlu0 %v101
    %v103 = vpop.xlane.xlu0 %102
    %v104 = vrot.slane %v103, 4
    %v105 = vadd.f32 %v103, %v104
    %v106 = vrot.slane %v105, 2
    %v107 = vadd.f32 %v105, %v106
    %v108 = vrot.slane %v107, 1
    %v109 = vadd.f32 %v107, %v108
    %s110 = vtos %v109
    %v111 = vstv %s110
    %vm112 = vcmask 0
    %113 = vst.msk [vmem:[%s5] sm:$0x1] %vm112, %v111
    %v114 = vadd.f32 %v73, 0.0
    %v115 = vadd.f32 %v74, 0.0
    %118 = vset.pattern.permute.xlu0 0
    %119 = vperm.xlu0 %118, %v114
    %v120 = vpop.permute.xlu0 %119
    %121 = vset.pattern.permute.xlu0 0
    %122 = vperm.xlu0 %121, %v115
    %v123 = vpop.permute.xlu0 %122
    %v124 = vlaneseq
    %v125 = vshrl.u32 %v124, 7
    %v126 = vsub.s32 %v29, %v125
    %v127 = vrot.slane %v120, %v126
    %v128 = vlaneseq
    %v129 = vshrl.u32 %v128, 7
    %v130 = vsub.s32 %v29, %v129
    %v131 = vrot.slane %v123, %v130
    %v132 = vsel %vm97, %v131, %v127
    %v134 = vsel %vm100, %v132, 0.0
    %135 = vadd.xlane.f32.xlu0 %v134
    %v136 = vpop.xlane.xlu0 %135
    %v137 = vrot.slane %v136, 4
    %v138 = vadd.f32 %v136, %v137
    %v139 = vrot.slane %v138, 2
    %v140 = vadd.f32 %v138, %v139
    %v141 = vrot.slane %v140, 1
    %v142 = vadd.f32 %v140, %v141
    %s143 = vtos %v142
    %v144 = vstv %s143
    %145 = vst.msk [vmem:[%s5 + $0x1] sm:$0x1] %vm112, %v144
    %vm146 = vcmp.eq.s32.totalorder %v29, 3
    %v147 = vsel %vm146, %v24, 0.0
    %v148 = vsel %vm146, %v25, 0.0
    %v149 = vsel %vm30, %v147, 0.0
    %150 = vadd.xlane.f32.xlu0 %v149
    %v151 = vpop.xlane.xlu0 %150
    %v152 = vsel %vm30, %v148, 0.0
    %153 = vadd.xlane.f32.xlu0 %v152
    %v154 = vpop.xlane.xlu0 %153
    %vm155 = vcmp.lt.s32.totalorder %v29, 3
    %v156 = vsel %vm155, %v24, -inf
    %v157 = vsel %vm155, %v25, -inf
    %v158 = vsel %vm30, %v156, -inf
    %159 = vmax.xlane.f32.xlu0 %v158
    %v160 = vpop.xlane.xlu0 %159
    %v161 = vsel %vm30, %v157, -inf
    %162 = vmax.xlane.f32.xlu0 %v161
    %v163 = vpop.xlane.xlu0 %162
    %vm164 = vcmp.ge.f32.partialorder %v160, %v151
    %vm165 = vcmp.ge.f32.partialorder %v163, %v154
    %v166 = vsel %vm164, 1, 0
    %v167 = vsel %vm165, 1, 0
    %v168 = vcvt.s32.f32 %v166
    %v169 = vcvt.s32.f32 %v167
    %v172 = vlaneseq
    %v173 = vshrl.u32 %v172, 7
    %v174 = vsub.s32 %v29, %v173
    %v175 = vrot.slane %v168, %v174
    %v176 = vlaneseq
    %v177 = vshrl.u32 %v176, 7
    %v178 = vsub.s32 %v29, %v177
    %v179 = vrot.slane %v169, %v178
    %v180 = vsel %vm97, %v179, %v175
    %v182 = vsel %vm100, %v180, 0.0
    %183 = vadd.xlane.f32.xlu0 %v182
    %v184 = vpop.xlane.xlu0 %183
    %v185 = vld [vmem:[%s2] sm:$0x3]
    %v186 = vsub.f32 %v184, %v185
    %v187 = vand.u32 2147483647, %v186
    %vm188 = vcmask 1024
    %v189 = vsel %vm188, %v187, 0.0
    %190 = vadd.xlane.f32.xlu0 %v189
    %v191 = vpop.xlane.xlu0 %190
    %v192 = vrot.slane %v191, 4
    %v193 = vadd.f32 %v191, %v192
    %v194 = vrot.slane %v193, 2
    %v195 = vadd.f32 %v193, %v194
    %v196 = vrot.slane %v195, 1
    %v197 = vadd.f32 %v195, %v196
    %s198 = vtos %v197
    %v199 = vstv %s198
    %v200 = vmul.f32 %v199, 0.5
    %201 = vst.msk [vmem:[%s5 + $0x2] sm:$0x1] %vm112, %v200
    %202 = vst.msk [vmem:[%s5 + $0x3] sm:$0x1] %vm112, 0.0
  $region25: #{tpu_custom_call.1} parent=0 // pred_fallthru
    _
  %v203 = vld [vmem:[%s3] sm:$0xff]
  %v204 = vld [vmem:[%s3 + $0x8] sm:$0xff]
  %v205 = vld [vmem:[%s3 + $0x10] sm:$0xff]
  %v206 = vld [vmem:[%s3 + $0x18] sm:$0xff]
  %v207 = vld [vmem:[%s3 + $0x20] sm:$0xff]
  %v208 = vld [vmem:[%s3 + $0x28] sm:$0xff]
  %v209 = vld [vmem:[%s4] sm:$0xff]
  %v210 = vld [vmem:[%s4 + $0x8] sm:$0xff]
  %v211 = vld [vmem:[%s4 + $0x10] sm:$0xff]
  %v212 = vld [vmem:[%s4 + $0x18] sm:$0xff]
  %v213 = vld [vmem:[%s4 + $0x20] sm:$0xff]
  %v214 = vld [vmem:[%s4 + $0x28] sm:$0xff]
  %v215 = vlaneseq
  %v216 = vand.u32 %v215, 127
  %vm217 = vcmask 261120
  %v218 = vsel %vm217, %v203, -inf
  %219 = vmax.xlane.f32.xlu0 %v218
  %v220 = vpop.xlane.xlu0 %219
  %v221 = vsel %vm217, %v204, -inf
  %222 = vmax.xlane.f32.xlu0 %v221
  %v223 = vpop.xlane.xlu0 %222
  %v224 = vsel %vm217, %v205, -inf
  %225 = vmax.xlane.f32.xlu0 %v224
  %v226 = vpop.xlane.xlu0 %225
  %v227 = vsel %vm217, %v206, -inf
  %228 = vmax.xlane.f32.xlu0 %v227
  %v229 = vpop.xlane.xlu0 %228
  %v230 = vsel %vm217, %v207, -inf
  %231 = vmax.xlane.f32.xlu0 %v230
  %v232 = vpop.xlane.xlu0 %231
  %v233 = vsel %vm217, %v208, -inf
  %234 = vmax.xlane.f32.xlu0 %v233
  %v235 = vpop.xlane.xlu0 %234
  %v236 = vsub.f32 %v203, %v220
  %v237 = vsub.f32 %v204, %v223
  %v238 = vsub.f32 %v205, %v226
  %v239 = vsub.f32 %v206, %v229
  %v240 = vsub.f32 %v207, %v232
  %v241 = vsub.f32 %v208, %v235
  %v242 = vmul.f32 %v236, 1.442695
  %v243 = vpow.pop %v242
  %v244 = vmul.f32 %v237, 1.442695
  %v245 = vpow.pop %v244
  %v246 = vmul.f32 %v238, 1.442695
  %v247 = vpow.pop %v246
  %v248 = vmul.f32 %v239, 1.442695
  %v249 = vpow.pop %v248
  %v250 = vmul.f32 %v240, 1.442695
  %v251 = vpow.pop %v250
  %v252 = vmul.f32 %v241, 1.442695
  %v253 = vpow.pop %v252
  %v254 = vsel %vm217, %v243, 0.0
  %255 = vadd.xlane.f32.xlu0 %v254
  %v256 = vpop.xlane.xlu0 %255
  %v257 = vsel %vm217, %v245, 0.0
  %258 = vadd.xlane.f32.xlu0 %v257
  %v259 = vpop.xlane.xlu0 %258
  %v260 = vsel %vm217, %v247, 0.0
  %261 = vadd.xlane.f32.xlu0 %v260
  %v262 = vpop.xlane.xlu0 %261
  %v263 = vsel %vm217, %v249, 0.0
  %264 = vadd.xlane.f32.xlu0 %v263
  %v265 = vpop.xlane.xlu0 %264
  %v266 = vsel %vm217, %v251, 0.0
  %267 = vadd.xlane.f32.xlu0 %v266
  %v268 = vpop.xlane.xlu0 %267
  %v269 = vsel %vm217, %v253, 0.0
  %270 = vadd.xlane.f32.xlu0 %v269
  %v271 = vpop.xlane.xlu0 %270
  %v272 = vlog2.pop %v256
  %v273 = vmul.f32 %v272, 0.6931472
  %v274 = vlog2.pop %v259
  %v275 = vmul.f32 %v274, 0.6931472
  %v276 = vlog2.pop %v262
  %v277 = vmul.f32 %v276, 0.6931472
  %v278 = vlog2.pop %v265
  %v279 = vmul.f32 %v278, 0.6931472
  %v280 = vlog2.pop %v268
  %v281 = vmul.f32 %v280, 0.6931472
  %v282 = vlog2.pop %v271
  %v283 = vmul.f32 %v282, 0.6931472
  %v284 = vadd.f32 %v273, %v220
  %v285 = vadd.f32 %v275, %v223
  %v286 = vadd.f32 %v277, %v226
  %v287 = vadd.f32 %v279, %v229
  %v288 = vadd.f32 %v281, %v232
  %v289 = vadd.f32 %v283, %v235
  %290 = vset.pattern.permute.xlu0 0
  %291 = vperm.xlu0 %290, %v209
  %v292 = vpop.permute.xlu0 %291
  %293 = vset.pattern.permute.xlu0 0
  %294 = vperm.xlu0 %293, %v210
  %v295 = vpop.permute.xlu0 %294
  %296 = vset.pattern.permute.xlu0 0
  %297 = vperm.xlu0 %296, %v211
  %v298 = vpop.permute.xlu0 %297
  %299 = vset.pattern.permute.xlu0 0
  %300 = vperm.xlu0 %299, %v212
  %v301 = vpop.permute.xlu0 %300
  %302 = vset.pattern.permute.xlu0 0
  %303 = vperm.xlu0 %302, %v213
  %v304 = vpop.permute.xlu0 %303
  %305 = vset.pattern.permute.xlu0 0
  %306 = vperm.xlu0 %305, %v214
  %v307 = vpop.permute.xlu0 %306
  %vm308 = vcmp.eq.s32.totalorder %v216, %v292
  %vm309 = vcmp.eq.s32.totalorder %v216, %v295
  %vm310 = vcmp.eq.s32.totalorder %v216, %v298
  %vm311 = vcmp.eq.s32.totalorder %v216, %v301
  %vm312 = vcmp.eq.s32.totalorder %v216, %v304
  %vm313 = vcmp.eq.s32.totalorder %v216, %v307
  %v314 = vsel %vm308, %v203, 0.0
  %v315 = vsel %vm309, %v204, 0.0
  %v316 = vsel %vm310, %v205, 0.0
  %v317 = vsel %vm311, %v206, 0.0
  %v318 = vsel %vm312, %v207, 0.0
  %v319 = vsel %vm313, %v208, 0.0
  %v320 = vsel %vm217, %v314, 0.0
  %321 = vadd.xlane.f32.xlu0 %v320
  %v322 = vpop.xlane.xlu0 %321
  %v323 = vsel %vm217, %v315, 0.0
  %324 = vadd.xlane.f32.xlu0 %v323
  %v325 = vpop.xlane.xlu0 %324
  %v326 = vsel %vm217, %v316, 0.0
  %327 = vadd.xlane.f32.xlu0 %v326
  %v328 = vpop.xlane.xlu0 %327
  %v329 = vsel %vm217, %v317, 0.0
  %330 = vadd.xlane.f32.xlu0 %v329
  %v331 = vpop.xlane.xlu0 %330
  %v332 = vsel %vm217, %v318, 0.0
  %333 = vadd.xlane.f32.xlu0 %v332
  %v334 = vpop.xlane.xlu0 %333
  %v335 = vsel %vm217, %v319, 0.0
  %336 = vadd.xlane.f32.xlu0 %v335
  %v337 = vpop.xlane.xlu0 %336
  %vm338 = vcmp.ge.s32.totalorder %v209, 0
  %vm339 = vcmp.ge.s32.totalorder %v210, 0
  %vm340 = vcmp.ge.s32.totalorder %v211, 0
  %vm341 = vcmp.ge.s32.totalorder %v212, 0
  %vm342 = vcmp.ge.s32.totalorder %v213, 0
  %vm343 = vcmp.ge.s32.totalorder %v214, 0
  %v344 = vsel %vm338, 1, 0
  %v345 = vsel %vm339, 1, 0
  %v346 = vsel %vm340, 1, 0
  %v347 = vsel %vm341, 1, 0
  %v348 = vsel %vm342, 1, 0
  %v349 = vsel %vm343, 1, 0
  %v350 = vcvt.s32.f32 %v344
  %v351 = vcvt.s32.f32 %v345
  %v352 = vcvt.s32.f32 %v346
  %v353 = vcvt.s32.f32 %v347
  %v354 = vcvt.s32.f32 %v348
  %v355 = vcvt.s32.f32 %v349
  %v356 = vsub.f32 %v284, %v322
  %v357 = vsub.f32 %v285, %v325
  %v358 = vsub.f32 %v286, %v328
  %v359 = vsub.f32 %v287, %v331
  %v360 = vsub.f32 %v288, %v334
  %v361 = vsub.f32 %v289, %v337
  %v362 = vmul.f32 %v350, %v356
  %v363 = vmul.f32 %v351, %v357
  %v364 = vmul.f32 %v352, %v358
  %v365 = vmul.f32 %v353, %v359
  %v366 = vmul.f32 %v354, %v360
  %v367 = vmul.f32 %v355, %v361
  %v368 = vld [vmem:[%s5 + $0x3] sm:$0x1]
  %vm369 = vcmask 7168
  %v370 = vsel %vm369, %v362, 0.0
  %v371 = vsel %vm369, %v363, 0.0
  %v372 = vadd.f32 %v370, %v371
  %v373 = vsel %vm369, %v364, 0.0
  %v374 = vadd.f32 %v372, %v373
  %v375 = vsel %vm369, %v365, 0.0
  %v376 = vadd.f32 %v374, %v375
  %v377 = vsel %vm369, %v366, 0.0
  %v378 = vadd.f32 %v376, %v377
  %v379 = vsel %vm369, %v367, 0.0
  %v380 = vadd.f32 %v378, %v379
  %381 = vadd.xlane.f32.xlu0 %v380
  %v382 = vpop.xlane.xlu0 %381
  %v383 = vrot.slane %v382, 4
  %v384 = vadd.f32 %v382, %v383
  %v385 = vrot.slane %v384, 2
  %v386 = vadd.f32 %v384, %v385
  %v387 = vrot.slane %v386, 1
  %v388 = vadd.f32 %v386, %v387
  %s389 = vtos %v388
  %v390 = vstv %s389
  %v391 = vadd.f32 %v368, %v390
  %vm392 = vcmask 0
  %393 = vst.msk [vmem:[%s5 + $0x3] sm:$0x1] %vm392, %v391
  // Predicated region
  $region26: #{tpu_custom_call.1} parent=0 // pred_check
    _
  $region27: #{tpu_custom_call.1} parent=0 // pred_check_branch
    %395 = sbr.rel (0) target = $region29
  $region28: #{tpu_custom_call.1} parent=0 // pred_region
    _
  $region29: #{tpu_custom_call.1} parent=0 // pred_fallthru
    _
  // Predicated region
  $region30: #{tpu_custom_call.1} parent=0 // pred_check
    _
  $region31: #{tpu_custom_call.1} parent=0 // pred_check_branch
    %397 = sbr.rel (0) target = $region33
  $region32: #{tpu_custom_call.1} parent=0 // pred_region
    _
  $region33: #{tpu_custom_call.1} parent=0 // pred_fallthru
    _

</llo_original>
